<compile_context>
chip_gen: v5e
topology: v5e:2x2
jax: 0.10.0
libtpu: 0.0.40
codegen_flags: <defaults>
</compile_context>

<pallas_src>
import functools

import jax
import jax.numpy as jnp
from jax.experimental import pallas as pl
from jax.experimental.pallas import tpu as pltpu


def _round_up(x: int, m: int) -> int:
    return pl.cdiv(x, m) * m


def joiner_kernel(enc_ref, dec_ref, w_ref, b_ref, out_ref, x_ref):
    j = pl.program_id(0)  # vocab tile (outer axis)
    i = pl.program_id(1)  # row tile  (inner axis)

    # Compute tanh(enc + dec) once per row tile (at the first vocab tile) and
    # cache it in VMEM as bf16 for the MXU.  Elementwise math stays in f32.
    @pl.when(j == 0)
    def _():
        x = jnp.tanh(enc_ref[...].astype(jnp.float32) +
                     dec_ref[...].astype(jnp.float32))
        x_ref[i] = x.astype(x_ref.dtype)

    acc = jnp.dot(x_ref[i], w_ref[...], preferred_element_type=jnp.float32)
    out_ref[...] = (acc + b_ref[...]).astype(out_ref.dtype)


def prepare_joiner_params(weight, bias, *, tn=512, weight_dtype=jnp.bfloat16):
    """One-time transform of the PyTorch nn.Linear params.

    weight: (vocab_size, joiner_dim) [PyTorch layout], bias: (vocab_size,).
    Returns (w_t, bias2d, vocab_size, tn) with w_t: (joiner_dim, V_pad) in bf16
    and bias2d: (1, V_pad) in f32, V_pad a multiple of tn.
    """
    V, D = weight.shape
    tn = min(tn, _round_up(V, 128))
    v_pad = _round_up(V, tn)
    w_t = jnp.asarray(weight).T.astype(weight_dtype)            # (D, V)
    w_t = jnp.pad(w_t, ((0, 0), (0, v_pad - V)))
    bias2d = jnp.pad(jnp.asarray(bias).astype(jnp.float32),
                     (0, v_pad - V)).reshape(1, v_pad)
    return w_t, bias2d, V, tn


def onnx_joiner(encoder_out, decoder_out, w_t, bias2d, vocab_size,
                *, tm=256, tn=512):
    """encoder_out, decoder_out: (N, D) f32; w_t: (D, V_pad) bf16 (pre-transposed,
    pre-padded); bias2d: (1, V_pad) f32.  Returns (N, vocab_size) f32 logits."""
    N, D = encoder_out.shape
    D_w, V_pad = w_t.shape
    assert D_w == D

    # Tile sizes: lane-dense multiples of (8, 128), clamped to the padded extents.
    tm = _round_up(min(tm, _round_up(N, 8)), 8)
    tn = min(tn, V_pad)
    assert V_pad % tn == 0, "weight must be prepared with a compatible tn"

    n_pad = _round_up(N, tm)
    if n_pad != N:
        pad = ((0, n_pad - N), (0, 0))
        encoder_out = jnp.pad(encoder_out, pad)
        decoder_out = jnp.pad(decoder_out, pad)

    n_row_tiles = n_pad // tm
    n_vocab_tiles = V_pad // tn
    grid = (n_vocab_tiles, n_row_tiles)  # vocab OUTER -> weight loop-invariant inner

    # VMEM budget (double-buffered inputs/outputs + activation cache), with headroom.
    need = (
        2 * 2 * tm * D * encoder_out.dtype.itemsize   # enc + dec tiles
        + 2 * D * tn * w_t.dtype.itemsize             # weight tile
        + 2 * tn * 4                                  # bias tile
        + 2 * tm * tn * 4                             # output tile
        + n_pad * D * 2                               # bf16 activation cache
    )
    vmem_limit = int(min(max(4 * need, 32 << 20), 48 << 20))  # sized for v7x (64 MiB phys)

    cost = pl.CostEstimate(
        flops=2 * n_pad * D * V_pad,
        transcendentals=n_pad * D,
        bytes_accessed=(2 * n_pad * D * 4) + (D * V_pad * w_t.dtype.itemsize)
        + (V_pad * 4) + (n_pad * V_pad * 4),
    )

    out = pl.pallas_call(
        joiner_kernel,
        out_shape=jax.ShapeDtypeStruct((n_pad, V_pad), encoder_out.dtype),
        grid_spec=pltpu.PrefetchScalarGridSpec(
            num_scalar_prefetch=0,
            grid=grid,
            in_specs=[
                pl.BlockSpec((tm, D), lambda j, i: (i, 0)),   # encoder_out tile
                pl.BlockSpec((tm, D), lambda j, i: (i, 0)),   # decoder_out tile
                pl.BlockSpec((D, tn), lambda j, i: (0, j)),   # W^T tile (inner-loop invariant)
                pl.BlockSpec((1, tn), lambda j, i: (0, j)),   # bias tile (inner-loop invariant)
            ],
            out_specs=pl.BlockSpec((tm, tn), lambda j, i: (i, j)),
            scratch_shapes=[pltpu.VMEM((n_row_tiles, tm, D), jnp.bfloat16)],
        ),
        compiler_params=pltpu.CompilerParams(
            # Row axis parallel (megacore on v7x); vocab axis arbitrary because the
            # activation cache is filled at vocab tile 0 and reused afterwards.
            dimension_semantics=("arbitrary", "parallel"),
            vmem_limit_bytes=vmem_limit,
        ),
        cost_estimate=cost,
    )(encoder_out, decoder_out, w_t, bias2d)

    return out[:N, :vocab_size]


if __name__ == "__main__":
    # Small shapes consistent with the zipformer joiner: joiner_dim=512, vocab=500.
    N, JOINER_DIM, VOCAB = 20, 512, 500

    key = jax.random.PRNGKey(0)
    k_enc, k_dec, k_w, k_b = jax.random.split(key, 4)

    encoder_out = jax.random.normal(k_enc, (N, JOINER_DIM), dtype=jnp.float32)
    decoder_out = jax.random.normal(k_dec, (N, JOINER_DIM), dtype=jnp.float32)
    # Synthetic nn.Linear(joiner_dim, vocab_size) params in PyTorch layout.
    weight = jax.random.normal(k_w, (VOCAB, JOINER_DIM), dtype=jnp.float32) * 0.02
    bias = jax.random.normal(k_b, (VOCAB,), dtype=jnp.float32) * 0.02

    # One-time parameter preparation (transpose + bf16 cast + vocab padding).
    w_t, bias2d, vocab_size, tn = prepare_joiner_params(weight, bias, tn=512)

    out = onnx_joiner(encoder_out, decoder_out, w_t, bias2d, vocab_size, tm=256, tn=tn)
    out = jax.block_until_ready(out)

    # Pure-JAX f32 reference; bf16 MXU inputs loosen the tolerance.
    ref = jnp.tanh(encoder_out + decoder_out) @ weight.T + bias
    assert out.shape == (N, VOCAB)
    assert jnp.allclose(out, ref, atol=2e-2, rtol=2e-2)

    print("KERNEL_OK")
</pallas_src>

<mosaic_0001>
module attributes {stable_mosaic.version = 11 : i64} {
  func.func @joiner_kernel(%arg0: i32, %arg1: i32, %arg2: memref<24x512xf32, #tpu.memory_space<vmem>>, %arg3: memref<24x512xf32, #tpu.memory_space<vmem>>, %arg4: memref<512x512xbf16, #tpu.memory_space<vmem>>, %arg5: memref<1x512xf32, #tpu.memory_space<vmem>>, %arg6: memref<24x512xf32, #tpu.memory_space<vmem>>, %arg7: memref<1x24x512xbf16, #tpu.memory_space<vmem>>) attributes {dimension_semantics = [#tpu.dimension_semantics<arbitrary>, #tpu.dimension_semantics<parallel>], iteration_bounds = array<i64: 1, 1>, scalar_prefetch = 0 : i64, scratch_operands = 1 : i64, tpu.core_type = #tpu.core_type<tc>, window_params = [{transform_indices = @transform_0, window_bounds = array<i64: 24, 512>}, {transform_indices = @transform_1, window_bounds = array<i64: 24, 512>}, {transform_indices = @transform_2, window_bounds = array<i64: 512, 512>}, {transform_indices = @transform_3, window_bounds = array<i64: 1, 512>}, {transform_indices = @transform_4, window_bounds = array<i64: 24, 512>}]} {
    %c0_i32 = arith.constant 0 : i32
    %0 = arith.cmpi eq, %arg0, %c0_i32 : i32
    %1 = arith.extui %0 : i1 to i32
    %c0_i32_0 = arith.constant 0 : i32
    %2 = arith.cmpi ne, %1, %c0_i32_0 : i32
    scf.if %2 {
      %c0_8 = arith.constant 0 : index
      %c0_9 = arith.constant 0 : index
      %12 = vector.load %arg2[%c0_8, %c0_9] : memref<24x512xf32, #tpu.memory_space<vmem>>, vector<24x512xf32>
      %c0_10 = arith.constant 0 : index
      %c0_11 = arith.constant 0 : index
      %13 = vector.load %arg3[%c0_10, %c0_11] : memref<24x512xf32, #tpu.memory_space<vmem>>, vector<24x512xf32>
      %14 = arith.addf %12, %13 : vector<24x512xf32>
      %15 = math.tanh %14 : vector<24x512xf32>
      %16 = arith.truncf %15 : vector<24x512xf32> to vector<24x512xbf16>
      %17 = arith.index_cast %arg1 : i32 to index
      %c0_12 = arith.constant 0 : index
      %c0_13 = arith.constant 0 : index
      %18 = vector.load %arg7[%17, %c0_12, %c0_13] : memref<1x24x512xbf16, #tpu.memory_space<vmem>>, vector<1x24x512xbf16>
      %19 = vector.shape_cast %18 : vector<1x24x512xbf16> to vector<24x512xbf16>
      %20 = vector.shape_cast %16 : vector<24x512xbf16> to vector<1x24x512xbf16>
      tpu.vector_store %arg7[%17, %c0_12, %c0_13], %20 {strides = array<i32>} : memref<1x24x512xbf16, #tpu.memory_space<vmem>>, vector<1x24x512xbf16>,
    } else {
    }
    %3 = arith.index_cast %arg1 : i32 to index
    %c0 = arith.constant 0 : index
    %c0_1 = arith.constant 0 : index
    %4 = vector.load %arg7[%3, %c0, %c0_1] : memref<1x24x512xbf16, #tpu.memory_space<vmem>>, vector<1x24x512xbf16>
    %5 = vector.shape_cast %4 : vector<1x24x512xbf16> to vector<24x512xbf16>
    %c0_2 = arith.constant 0 : index
    %c0_3 = arith.constant 0 : index
    %6 = vector.load %arg4[%c0_2, %c0_3] : memref<512x512xbf16, #tpu.memory_space<vmem>>, vector<512x512xbf16>
    %cst = arith.constant dense<0.000000e+00> : vector<24x512xf32>
    %7 = tpu.matmul %5, %6, %cst {dimension_numbers = #tpu.dot_dimension_numbers<[1], [0], [0], [1], [0, 0, 1, 1], [], []>} : vector<24x512xbf16>, vector<512x512xbf16>, vector<24x512xf32> -> vector<24x512xf32>
    %c0_4 = arith.constant 0 : index
    %c0_5 = arith.constant 0 : index
    %8 = vector.load %arg5[%c0_4, %c0_5] : memref<1x512xf32, #tpu.memory_space<vmem>>, vector<1x512xf32>
    %9 = vector.broadcast %8 : vector<1x512xf32> to vector<24x512xf32>
    %10 = arith.addf %7, %9 : vector<24x512xf32>
    %c0_6 = arith.constant 0 : index
    %c0_7 = arith.constant 0 : index
    %11 = vector.load %arg6[%c0_6, %c0_7] : memref<24x512xf32, #tpu.memory_space<vmem>>, vector<24x512xf32>
    tpu.vector_store %arg6[%c0_6, %c0_7], %10 {strides = array<i32>} : memref<24x512xf32, #tpu.memory_space<vmem>>, vector<24x512xf32>,
    return
  }
  func.func @transform_0(%arg0: i32, %arg1: i32) -> (i32, i32) {
    %c0_i32 = arith.constant 0 : i32
    %c0_i32_0 = arith.constant 0 : i32
    return %arg1, %c0_i32 : i32, i32
  }
  func.func @transform_1(%arg0: i32, %arg1: i32) -> (i32, i32) {
    %c0_i32 = arith.constant 0 : i32
    %c0_i32_0 = arith.constant 0 : i32
    return %arg1, %c0_i32 : i32, i32
  }
  func.func @transform_2(%arg0: i32, %arg1: i32) -> (i32, i32) {
    %c0_i32 = arith.constant 0 : i32
    %c0_i32_0 = arith.constant 0 : i32
    return %c0_i32, %arg0 : i32, i32
  }
  func.func @transform_3(%arg0: i32, %arg1: i32) -> (i32, i32) {
    %c0_i32 = arith.constant 0 : i32
    %c0_i32_0 = arith.constant 0 : i32
    return %c0_i32, %arg0 : i32, i32
  }
  func.func @transform_4(%arg0: i32, %arg1: i32) -> (i32, i32) {
    %c0_i32 = arith.constant 0 : i32
    return %arg1, %arg0 : i32, i32
  }
}

</mosaic_0001>

<llo_original>
// kernel: tpu_custom_call.1
$region0: #{tpu_custom_call.1}
  #allocation0 [shape = 'u32[]', space=smem, size = 0x4, offset = 0x4, fixed_abs, tag = 'smem constant byte address 0x4 - core index']
  #allocation1 [shape = 'u32[72,128]{1,0:T(1,128)}', space=vmem, size = 0x9000, scoped, tag = 'internal scratch']
  #allocation2 [shape = 'bf16[1,24,512]{2,1,0:T(8,128)(2,1)}', space=vmem, size = 0x6000, scoped, tag = 'scratch operand']
  %s0 = inlined_call_operand.hbm [shape: f32[24,512], index: 0, kind: input, shape index: {}]
  %s1 = inlined_call_operand.hbm [shape: f32[24,512], index: 1, kind: input, shape index: {}]
  %s2 = inlined_call_operand.hbm [shape: bf16[512,512], index: 2, kind: input, shape index: {}]
  %s3 = inlined_call_operand.hbm [shape: f32[1,512], index: 3, kind: input, shape index: {}]
  %s4 = inlined_call_operand.hbm [shape: f32[24,512], index: 4, kind: output, shape index: {}]
  %s5 = sld [smem:[#allocation0]]
  $region46: #{tpu_custom_call.1} parent=0
    _
  %s7 = ssub.s32 1, %s5
  %s8 = scalar_select 0, %s7, %s5
  $region1: #{tpu_custom_call.1} parent=0
    #allocation3 [shape = 'u8[49152]{0}', space=vmem, size = 0xc000, scoped, tag = 'input window, operand 0, single buffered']
    #allocation4 [shape = 's32[1]{0}', space=sflag, size = 0x4, scoped, tag = 'scoped memory for tpu_custom_call.1']
    #allocation5 [shape = 's32[1]{0}', space=sflag, size = 0x4, scoped, tag = 'scoped memory for tpu_custom_call.1']
    #allocation6 [shape = 'u8[49152]{0}', space=vmem, size = 0xc000, scoped, tag = 'input window, operand 1, single buffered']
    #allocation7 [shape = 's32[1]{0}', space=sflag, size = 0x4, scoped, tag = 'scoped memory for tpu_custom_call.1']
    #allocation8 [shape = 'u8[524288]{0}', space=vmem, size = 0x80000, scoped, tag = 'input window, operand 2, single buffered']
    #allocation9 [shape = 'u8[2048]{0}', space=vmem, size = 0x800, scoped, tag = 'input window, operand 3, single buffered']
    #allocation10 [shape = 's32[1]{0}', space=sflag, size = 0x4, scoped, tag = 'scoped memory for tpu_custom_call.1']
    #allocation11 [shape = 'u8[49152]{0}', space=vmem, size = 0xc000, scoped, tag = 'output window, operand 0, single buffered']
    %9 = vsyncpa [#allocation4], 0
    %10 = vsyncpa [#allocation7], 0
    %11 = vsyncpa [#allocation10], 0
    %12 = vsyncpa [#allocation5], 0
    // Predicated region
    $region2: #{tpu_custom_call.1} parent=1 // pred_check
      _
    $region3: #{tpu_custom_call.1} parent=1 // pred_check_branch
      %14 = sbr.rel (0) target = $region5
    $region4: #{tpu_custom_call.1} parent=1 // pred_region
      %16 = vsyncadd [#allocation4], 0
      %s17 = sshll.u32 %s0, 4
      %s18 = int_to_ptr.hbm [resolvable:$true] %s17
      %s19 = sshll.u32 [#allocation3], 4
      %s20 = int_to_ptr.vmem [resolvable:$true] %s19
      %25 = dma.hbm_to_vmem [thread:$0]  %s18, 1536, %s20, [#allocation4], 512, 512, 32
    $region5: #{tpu_custom_call.1} parent=1 // pred_fallthru
      _
    // Predicated region
    $region6: #{tpu_custom_call.1} parent=1 // pred_check
      _
    $region7: #{tpu_custom_call.1} parent=1 // pred_check_branch
      %27 = sbr.rel (0) target = $region9
    $region8: #{tpu_custom_call.1} parent=1 // pred_region
      %29 = vsyncadd [#allocation7], 0
      %s30 = sshll.u32 %s1, 4
      %s31 = int_to_ptr.hbm [resolvable:$true] %s30
      %s32 = sshll.u32 [#allocation6], 4
      %s33 = int_to_ptr.vmem [resolvable:$true] %s32
      %38 = dma.hbm_to_vmem [thread:$0]  %s31, 1536, %s33, [#allocation7], 512, 512, 32
    $region9: #{tpu_custom_call.1} parent=1 // pred_fallthru
      _
    // Predicated region
    $region10: #{tpu_custom_call.1} parent=1 // pred_check
      _
    $region11: #{tpu_custom_call.1} parent=1 // pred_check_branch
      %40 = sbr.rel (0) target = $region13
    $region12: #{tpu_custom_call.1} parent=1 // pred_region
      %42 = vsyncadd [#allocation7], 0
      %s43 = sshll.u32 %s2, 4
      %s44 = int_to_ptr.hbm [resolvable:$true] %s43
      %s45 = sshll.u32 [#allocation8], 4
      %s46 = int_to_ptr.vmem [resolvable:$true] %s45
      %51 = dma.hbm_to_vmem [thread:$0]  %s44, 16384, %s46, [#allocation7], 256, 256, 16
    $region13: #{tpu_custom_call.1} parent=1 // pred_fallthru
      _
    // Predicated region
    $region14: #{tpu_custom_call.1} parent=1 // pred_check
      _
    $region15: #{tpu_custom_call.1} parent=1 // pred_check_branch
      %53 = sbr.rel (0) target = $region17
    $region16: #{tpu_custom_call.1} parent=1 // pred_region
      %55 = vsyncadd [#allocation10], 0
      %s57 = sshll.u32 %s3, 4
      %s58 = int_to_ptr.hbm [resolvable:$true] %s57
      %s59 = sshll.u32 [#allocation9], 4
      %s60 = int_to_ptr.vmem [resolvable:$true] %s59
      %62 = dma.hbm_to_vmem [thread:$0]  %s58, 64, %s60, [#allocation10]
    $region17: #{tpu_custom_call.1} parent=1 // pred_fallthru
      _
    // Predicated region
    $region18: #{tpu_custom_call.1} parent=1 // pred_check
      _
    $region19: #{tpu_custom_call.1} parent=1 // pred_check_branch
      %64 = sbr.rel (0) target = $region21
    $region20: #{tpu_custom_call.1} parent=1 // pred_region
      %66 = dma.done [#allocation4], 1536
    $region21: #{tpu_custom_call.1} parent=1 // pred_fallthru
      _
    // Predicated region
    $region22: #{tpu_custom_call.1} parent=1 // pred_check
      _
    $region23: #{tpu_custom_call.1} parent=1 // pred_check_branch
      %68 = sbr.rel (0) target = $region25
    $region24: #{tpu_custom_call.1} parent=1 // pred_region
      %70 = dma.done [#allocation7], 1536
    $region25: #{tpu_custom_call.1} parent=1 // pred_fallthru
      _
    // Predicated region
    $region26: #{tpu_custom_call.1} parent=1 // pred_check
      _
    $region27: #{tpu_custom_call.1} parent=1 // pred_check_branch
      %72 = sbr.rel (0) target = $region29
    $region28: #{tpu_custom_call.1} parent=1 // pred_region
      %74 = dma.done [#allocation7], 16384
    $region29: #{tpu_custom_call.1} parent=1 // pred_fallthru
      _
    // Predicated region
    $region30: #{tpu_custom_call.1} parent=1 // pred_check
      _
    $region31: #{tpu_custom_call.1} parent=1 // pred_check_branch
      %76 = sbr.rel (0) target = $region33
    $region32: #{tpu_custom_call.1} parent=1 // pred_region
      %78 = dma.done [#allocation10], 64
    $region33: #{tpu_custom_call.1} parent=1 // pred_fallthru
      _
    %p79 = scmp.eq.s32.totalorder 0, 0
    // Predicated region
    $region34: #{tpu_custom_call.1} parent=1 // pred_check
      %p80 = pneg %p79
    $region35: #{tpu_custom_call.1} parent=1 // pred_check_branch
      %82 = sbr.rel (%p80) target = $region37
    $region36: #{tpu_custom_call.1} parent=1 // pred_region
      %v83 = vld [vmem:[#allocation3] sm:$0xff]
      %v84 = vld [vmem:[#allocation3 + $0x8] sm:$0xff]
      %v85 = vld [vmem:[#allocation3 + $0x10] sm:$0xff]
      %v86 = vld [vmem:[#allocation3 + $0x18] sm:$0xff]
      %v87 = vld [vmem:[#allocation3 + $0x20] sm:$0xff]
      %v88 = vld [vmem:[#allocation3 + $0x28] sm:$0xff]
      %v89 = vld [vmem:[#allocation3 + $0x30] sm:$0xff]
      %v90 = vld [vmem:[#allocation3 + $0x38] sm:$0xff]
      %v91 = vld [vmem:[#allocation3 + $0x40] sm:$0xff]
      %v92 = vld [vmem:[#allocation3 + $0x48] sm:$0xff]
      %v93 = vld [vmem:[#allocation3 + $0x50] sm:$0xff]
      %v94 = vld [vmem:[#allocation3 + $0x58] sm:$0xff]
      %v95 = vld [vmem:[#allocation6] sm:$0xff]
      %v96 = vld [vmem:[#allocation6 + $0x8] sm:$0xff]
      %v97 = vld [vmem:[#allocation6 + $0x10] sm:$0xff]
      %v98 = vld [vmem:[#allocation6 + $0x18] sm:$0xff]
      %v99 = vld [vmem:[#allocation6 + $0x20] sm:$0xff]
      %v100 = vld [vmem:[#allocation6 + $0x28] sm:$0xff]
      %v101 = vld [vmem:[#allocation6 + $0x30] sm:$0xff]
      %v102 = vld [vmem:[#allocation6 + $0x38] sm:$0xff]
      %v103 = vld [vmem:[#allocation6 + $0x40] sm:$0xff]
      %v104 = vld [vmem:[#allocation6 + $0x48] sm:$0xff]
      %v105 = vld [vmem:[#allocation6 + $0x50] sm:$0xff]
      %v106 = vld [vmem:[#allocation6 + $0x58] sm:$0xff]
      %v107 = vadd.f32 %v83, %v95
      %v108 = vadd.f32 %v84, %v96
      %v109 = vadd.f32 %v85, %v97
      %v110 = vadd.f32 %v86, %v98
      %v111 = vadd.f32 %v87, %v99
      %v112 = vadd.f32 %v88, %v100
      %v113 = vadd.f32 %v89, %v101
      %v114 = vadd.f32 %v90, %v102
      %v115 = vadd.f32 %v91, %v103
      %v116 = vadd.f32 %v92, %v104
      %v117 = vadd.f32 %v93, %v105
      %v118 = vadd.f32 %v94, %v106
      %v119 = vtanh.pop %v107
      %v120 = vtanh.pop %v108
      %v121 = vtanh.pop %v109
      %v122 = vtanh.pop %v110
      %v123 = vtanh.pop %v111
      %v124 = vtanh.pop %v112
      %v125 = vtanh.pop %v113
      %v126 = vtanh.pop %v114
      %v127 = vtanh.pop %v115
      %v128 = vtanh.pop %v116
      %v129 = vtanh.pop %v117
      %v130 = vtanh.pop %v118
      %v131 = vpack.c.bf16 %v120, %v119
      %v132 = vpack.c.bf16 %v122, %v121
      %v133 = vpack.c.bf16 %v124, %v123
      %v134 = vpack.c.bf16 %v126, %v125
      %v135 = vpack.c.bf16 %v128, %v127
      %v136 = vpack.c.bf16 %v130, %v129
      %s137 = smul.u32 0, 12
      %s138 = smul.addr %s137, 4
      %s139 = scalar_lea.vmem [#allocation2], %s138
      %140 = vst [vmem:[%s139] sm:$0xff] %v131
      %141 = vst [vmem:[%s139 + $0x8] sm:$0xff] %v132
      %142 = vst [vmem:[%s139 + $0x10] sm:$0xff] %v133
      %143 = vst [vmem:[%s139 + $0x18] sm:$0xff] %v134
      %144 = vst [vmem:[%s139 + $0x20] sm:$0xff] %v135
      %145 = vst [vmem:[%s139 + $0x28] sm:$0xff] %v136
    $region37: #{tpu_custom_call.1} parent=1 // pred_fallthru
      _
    %s146 = smul.u32 0, 12
    %s147 = smul.addr %s146, 4
    %s148 = scalar_lea.vmem [#allocation2], %s147
    %v149 = vld [vmem:[%s148] sm:$0xff]
    %v150 = vld [vmem:[%s148 + $0x8] sm:$0xff]
    %v151 = vld [vmem:[%s148 + $0x10] sm:$0xff]
    %v152 = vld [vmem:[%s148 + $0x18] sm:$0xff]
    %v153 = vld [vmem:[%s148 + $0x20] sm:$0xff]
    %v154 = vld [vmem:[%s148 + $0x28] sm:$0xff]
    %v155 = vld [vmem:[#allocation8] sm:$0xff]
    %v156 = vld [vmem:[#allocation8 + $0x8] sm:$0xff]
    %v157 = vld [vmem:[#allocation8 + $0x10] sm:$0xff]
    %v158 = vld [vmem:[#allocation8 + $0x18] sm:$0xff]
    %v159 = vld [vmem:[#allocation8 + $0x20] sm:$0xff]
    %v160 = vld [vmem:[#allocation8 + $0x28] sm:$0xff]
    %v161 = vld [vmem:[#allocation8 + $0x30] sm:$0xff]
    %v162 = vld [vmem:[#allocation8 + $0x38] sm:$0xff]
    %v163 = vld [vmem:[#allocation8 + $0x40] sm:$0xff]
    %v164 = vld [vmem:[#allocation8 + $0x48] sm:$0xff]
    %v165 = vld [vmem:[#allocation8 + $0x50] sm:$0xff]
    %v166 = vld [vmem:[#allocation8 + $0x58] sm:$0xff]
    %v167 = vld [vmem:[#allocation8 + $0x60] sm:$0xff]
    %v168 = vld [vmem:[#allocation8 + $0x68] sm:$0xff]
    %v169 = vld [vmem:[#allocation8 + $0x70] sm:$0xff]
    %v170 = vld [vmem:[#allocation8 + $0x78] sm:$0xff]
    %v171 = vld [vmem:[#allocation8 + $0x80] sm:$0xff]
    %v172 = vld [vmem:[#allocation8 + $0x88] sm:$0xff]
    %v173 = vld [vmem:[#allocation8 + $0x90] sm:$0xff]
    %v174 = vld [vmem:[#allocation8 + $0x98] sm:$0xff]
    %v175 = vld [vmem:[#allocation8 + $0xa0] sm:$0xff]
    %v176 = vld [vmem:[#allocation8 + $0xa8] sm:$0xff]
    %v177 = vld [vmem:[#allocation8 + $0xb0] sm:$0xff]
    %v178 = vld [vmem:[#allocation8 + $0xb8] sm:$0xff]
    %v179 = vld [vmem:[#allocation8 + $0xc0] sm:$0xff]
    %v180 = vld [vmem:[#allocation8 + $0xc8] sm:$0xff]
    %v181 = vld [vmem:[#allocation8 + $0xd0] sm:$0xff]
    %v182 = vld [vmem:[#allocation8 + $0xd8] sm:$0xff]
    %v183 = vld [vmem:[#allocation8 + $0xe0] sm:$0xff]
    %v184 = vld [vmem:[#allocation8 + $0xe8] sm:$0xff]
    %v185 = vld [vmem:[#allocation8 + $0xf0] sm:$0xff]
    %v186 = vld [vmem:[#allocation8 + $0xf8] sm:$0xff]
    %v187 = vld [vmem:[#allocation8 + $0x100] sm:$0xff]
    %v188 = vld [vmem:[#allocation8 + $0x108] sm:$0xff]
    %v189 = vld [vmem:[#allocation8 + $0x110] sm:$0xff]
    %v190 = vld [vmem:[#allocation8 + $0x118] sm:$0xff]
    %v191 = vld [vmem:[#allocation8 + $0x120] sm:$0xff]
    %v192 = vld [vmem:[#allocation8 + $0x128] sm:$0xff]
    %v193 = vld [vmem:[#allocation8 + $0x130] sm:$0xff]
    %v194 = vld [vmem:[#allocation8 + $0x138] sm:$0xff]
    %v195 = vld [vmem:[#allocation8 + $0x140] sm:$0xff]
    %v196 = vld [vmem:[#allocation8 + $0x148] sm:$0xff]
    %v197 = vld [vmem:[#allocation8 + $0x150] sm:$0xff]
    %v198 = vld [vmem:[#allocation8 + $0x158] sm:$0xff]
    %v199 = vld [vmem:[#allocation8 + $0x160] sm:$0xff]
    %v200 = vld [vmem:[#allocation8 + $0x168] sm:$0xff]
    %v201 = vld [vmem:[#allocation8 + $0x170] sm:$0xff]
    %v202 = vld [vmem:[#allocation8 + $0x178] sm:$0xff]
    %v203 = vld [vmem:[#allocation8 + $0x180] sm:$0xff]
    %v204 = vld [vmem:[#allocation8 + $0x188] sm:$0xff]
    %v205 = vld [vmem:[#allocation8 + $0x190] sm:$0xff]
    %v206 = vld [vmem:[#allocation8 + $0x198] sm:$0xff]
    %v207 = vld [vmem:[#allocation8 + $0x1a0] sm:$0xff]
    %v208 = vld [vmem:[#allocation8 + $0x1a8] sm:$0xff]
    %v209 = vld [vmem:[#allocation8 + $0x1b0] sm:$0xff]
    %v210 = vld [vmem:[#allocation8 + $0x1b8] sm:$0xff]
    %v211 = vld [vmem:[#allocation8 + $0x1c0] sm:$0xff]
    %v212 = vld [vmem:[#allocation8 + $0x1c8] sm:$0xff]
    %v213 = vld [vmem:[#allocation8 + $0x1d0] sm:$0xff]
    %v214 = vld [vmem:[#allocation8 + $0x1d8] sm:$0xff]
    %v215 = vld [vmem:[#allocation8 + $0x1e0] sm:$0xff]
    %v216 = vld [vmem:[#allocation8 + $0x1e8] sm:$0xff]
    %v217 = vld [vmem:[#allocation8 + $0x1f0] sm:$0xff]
    %v218 = vld [vmem:[#allocation8 + $0x1f8] sm:$0xff]
    %v219 = vld [vmem:[#allocation8 + $0x200] sm:$0xff]
    %v220 = vld [vmem:[#allocation8 + $0x208] sm:$0xff]
    %v221 = vld [vmem:[#allocation8 + $0x210] sm:$0xff]
    %v222 = vld [vmem:[#allocation8 + $0x218] sm:$0xff]
    %v223 = vld [vmem:[#allocation8 + $0x220] sm:$0xff]
    %v224 = vld [vmem:[#allocation8 + $0x228] sm:$0xff]
    %v225 = vld [vmem:[#allocation8 + $0x230] sm:$0xff]
    %v226 = vld [vmem:[#allocation8 + $0x238] sm:$0xff]
    %v227 = vld [vmem:[#allocation8 + $0x240] sm:$0xff]
    %v228 = vld [vmem:[#allocation8 + $0x248] sm:$0xff]
    %v229 = vld [vmem:[#allocation8 + $0x250] sm:$0xff]
    %v230 = vld [vmem:[#allocation8 + $0x258] sm:$0xff]
    %v231 = vld [vmem:[#allocation8 + $0x260] sm:$0xff]
    %v232 = vld [vmem:[#allocation8 + $0x268] sm:$0xff]
    %v233 = vld [vmem:[#allocation8 + $0x270] sm:$0xff]
    %v234 = vld [vmem:[#allocation8 + $0x278] sm:$0xff]
    %v235 = vld [vmem:[#allocation8 + $0x280] sm:$0xff]
    %v236 = vld [vmem:[#allocation8 + $0x288] sm:$0xff]
    %v237 = vld [vmem:[#allocation8 + $0x290] sm:$0xff]
    %v238 = vld [vmem:[#allocation8 + $0x298] sm:$0xff]
    %v239 = vld [vmem:[#allocation8 + $0x2a0] sm:$0xff]
    %v240 = vld [vmem:[#allocation8 + $0x2a8] sm:$0xff]
    %v241 = vld [vmem:[#allocation8 + $0x2b0] sm:$0xff]
    %v242 = vld [vmem:[#allocation8 + $0x2b8] sm:$0xff]
    %v243 = vld [vmem:[#allocation8 + $0x2c0] sm:$0xff]
    %v244 = vld [vmem:[#allocation8 + $0x2c8] sm:$0xff]
    %v245 = vld [vmem:[#allocation8 + $0x2d0] sm:$0xff]
    %v246 = vld [vmem:[#allocation8 + $0x2d8] sm:$0xff]
    %v247 = vld [vmem:[#allocation8 + $0x2e0] sm:$0xff]
    %v248 = vld [vmem:[#allocation8 + $0x2e8] sm:$0xff]
    %v249 = vld [vmem:[#allocation8 + $0x2f0] sm:$0xff]
    %v250 = vld [vmem:[#allocation8 + $0x2f8] sm:$0xff]
    %v251 = vld [vmem:[#allocation8 + $0x300] sm:$0xff]
    %v252 = vld [vmem:[#allocation8 + $0x308] sm:$0xff]
    %v253 = vld [vmem:[#allocation8 + $0x310] sm:$0xff]
    %v254 = vld [vmem:[#allocation8 + $0x318] sm:$0xff]
    %v255 = vld [vmem:[#allocation8 + $0x320] sm:$0xff]
    %v256 = vld [vmem:[#allocation8 + $0x328] sm:$0xff]
    %v257 = vld [vmem:[#allocation8 + $0x330] sm:$0xff]
    %v258 = vld [vmem:[#allocation8 + $0x338] sm:$0xff]
    %v259 = vld [vmem:[#allocation8 + $0x340] sm:$0xff]
    %v260 = vld [vmem:[#allocation8 + $0x348] sm:$0xff]
    %v261 = vld [vmem:[#allocation8 + $0x350] sm:$0xff]
    %v262 = vld [vmem:[#allocation8 + $0x358] sm:$0xff]
    %v263 = vld [vmem:[#allocation8 + $0x360] sm:$0xff]
    %v264 = vld [vmem:[#allocation8 + $0x368] sm:$0xff]
    %v265 = vld [vmem:[#allocation8 + $0x370] sm:$0xff]
    %v266 = vld [vmem:[#allocation8 + $0x378] sm:$0xff]
    %v267 = vld [vmem:[#allocation8 + $0x380] sm:$0xff]
    %v268 = vld [vmem:[#allocation8 + $0x388] sm:$0xff]
    %v269 = vld [vmem:[#allocation8 + $0x390] sm:$0xff]
    %v270 = vld [vmem:[#allocation8 + $0x398] sm:$0xff]
    %v271 = vld [vmem:[#allocation8 + $0x3a0] sm:$0xff]
    %v272 = vld [vmem:[#allocation8 + $0x3a8] sm:$0xff]
    %v273 = vld [vmem:[#allocation8 + $0x3b0] sm:$0xff]
    %v274 = vld [vmem:[#allocation8 + $0x3b8] sm:$0xff]
    %v275 = vld [vmem:[#allocation8 + $0x3c0] sm:$0xff]
    %v276 = vld [vmem:[#allocation8 + $0x3c8] sm:$0xff]
    %v277 = vld [vmem:[#allocation8 + $0x3d0] sm:$0xff]
    %v278 = vld [vmem:[#allocation8 + $0x3d8] sm:$0xff]
    %v279 = vld [vmem:[#allocation8 + $0x3e0] sm:$0xff]
    %v280 = vld [vmem:[#allocation8 + $0x3e8] sm:$0xff]
    %v281 = vld [vmem:[#allocation8 + $0x3f0] sm:$0xff]
    %v282 = vld [vmem:[#allocation8 + $0x3f8] sm:$0xff]
    %v283 = vld [vmem:[#allocation9] sm:$0xf]
    %v285 = vperm.slane %v283, 0
    %v286 = vperm.slane %v283, 1
    %v287 = vperm.slane %v283, 2
    %v288 = vperm.slane %v283, 3
    %v299 = vunpack.c.l.b16 %v149
    %v300 = vunpack.c.h.b16 %v149
    %v301 = vunpack.c.l.b16 %v150
    %v302 = vunpack.c.h.b16 %v150
    %v303 = vunpack.c.l.b16 %v151
    %v304 = vunpack.c.h.b16 %v151
    %v305 = vunpack.c.l.b16 %v152
    %v306 = vunpack.c.h.b16 %v152
    %v307 = vunpack.c.l.b16 %v153
    %v308 = vunpack.c.h.b16 %v153
    %v309 = vunpack.c.l.b16 %v154
    %v310 = vunpack.c.h.b16 %v154
    %v311 = vpack.c.b16 %v303, %v299
    %v312 = vpack.c.b16 %v304, %v300
    %v313 = vpack.c.b16 %v305, %v301
    %v314 = vpack.c.b16 %v306, %v302
    %v315 = vpack.c.b16 %v307, %v307
    %v316 = vpack.c.b16 %v308, %v308
    %v317 = vpack.c.b16 %v309, %v309
    %v318 = vpack.c.b16 %v310, %v310
    %v455 = vunpack.c.l.b16 %v155
    %v456 = vunpack.c.h.b16 %v155
    %v457 = vunpack.c.l.b16 %v156
    %v458 = vunpack.c.h.b16 %v156
    %v459 = vunpack.c.l.b16 %v157
    %v460 = vunpack.c.h.b16 %v157
    %v461 = vunpack.c.l.b16 %v158
    %v462 = vunpack.c.h.b16 %v158
    %v463 = vunpack.c.l.b16 %v159
    %v464 = vunpack.c.h.b16 %v159
    %v465 = vunpack.c.l.b16 %v160
    %v466 = vunpack.c.h.b16 %v160
    %v467 = vunpack.c.l.b16 %v161
    %v468 = vunpack.c.h.b16 %v161
    %v469 = vunpack.c.l.b16 %v162
    %v470 = vunpack.c.h.b16 %v162
    %v471 = vunpack.c.l.b16 %v163
    %v472 = vunpack.c.h.b16 %v163
    %v473 = vunpack.c.l.b16 %v164
    %v474 = vunpack.c.h.b16 %v164
    %v475 = vunpack.c.l.b16 %v165
    %v476 = vunpack.c.h.b16 %v165
    %v477 = vunpack.c.l.b16 %v166
    %v478 = vunpack.c.h.b16 %v166
    %v479 = vunpack.c.l.b16 %v167
    %v480 = vunpack.c.h.b16 %v167
    %v481 = vunpack.c.l.b16 %v168
    %v482 = vunpack.c.h.b16 %v168
    %v483 = vunpack.c.l.b16 %v169
    %v484 = vunpack.c.h.b16 %v169
    %v485 = vunpack.c.l.b16 %v170
    %v486 = vunpack.c.h.b16 %v170
    %v487 = vunpack.c.l.b16 %v171
    %v488 = vunpack.c.h.b16 %v171
    %v489 = vunpack.c.l.b16 %v172
    %v490 = vunpack.c.h.b16 %v172
    %v491 = vunpack.c.l.b16 %v173
    %v492 = vunpack.c.h.b16 %v173
    %v493 = vunpack.c.l.b16 %v174
    %v494 = vunpack.c.h.b16 %v174
    %v495 = vunpack.c.l.b16 %v175
    %v496 = vunpack.c.h.b16 %v175
    %v497 = vunpack.c.l.b16 %v176
    %v498 = vunpack.c.h.b16 %v176
    %v499 = vunpack.c.l.b16 %v177
    %v500 = vunpack.c.h.b16 %v177
    %v501 = vunpack.c.l.b16 %v178
    %v502 = vunpack.c.h.b16 %v178
    %v503 = vunpack.c.l.b16 %v179
    %v504 = vunpack.c.h.b16 %v179
    %v505 = vunpack.c.l.b16 %v180
    %v506 = vunpack.c.h.b16 %v180
    %v507 = vunpack.c.l.b16 %v181
    %v508 = vunpack.c.h.b16 %v181
    %v509 = vunpack.c.l.b16 %v182
    %v510 = vunpack.c.h.b16 %v182
    %v511 = vunpack.c.l.b16 %v183
    %v512 = vunpack.c.h.b16 %v183
    %v513 = vunpack.c.l.b16 %v184
    %v514 = vunpack.c.h.b16 %v184
    %v515 = vunpack.c.l.b16 %v185
    %v516 = vunpack.c.h.b16 %v185
    %v517 = vunpack.c.l.b16 %v186
    %v518 = vunpack.c.h.b16 %v186
    %v519 = vunpack.c.l.b16 %v187
    %v520 = vunpack.c.h.b16 %v187
    %v521 = vunpack.c.l.b16 %v188
    %v522 = vunpack.c.h.b16 %v188
    %v523 = vunpack.c.l.b16 %v189
    %v524 = vunpack.c.h.b16 %v189
    %v525 = vunpack.c.l.b16 %v190
    %v526 = vunpack.c.h.b16 %v190
    %v527 = vunpack.c.l.b16 %v191
    %v528 = vunpack.c.h.b16 %v191
    %v529 = vunpack.c.l.b16 %v192
    %v530 = vunpack.c.h.b16 %v192
    %v531 = vunpack.c.l.b16 %v193
    %v532 = vunpack.c.h.b16 %v193
    %v533 = vunpack.c.l.b16 %v194
    %v534 = vunpack.c.h.b16 %v194
    %v535 = vunpack.c.l.b16 %v195
    %v536 = vunpack.c.h.b16 %v195
    %v537 = vunpack.c.l.b16 %v196
    %v538 = vunpack.c.h.b16 %v196
    %v539 = vunpack.c.l.b16 %v197
    %v540 = vunpack.c.h.b16 %v197
    %v541 = vunpack.c.l.b16 %v198
    %v542 = vunpack.c.h.b16 %v198
    %v543 = vunpack.c.l.b16 %v199
    %v544 = vunpack.c.h.b16 %v199
    %v545 = vunpack.c.l.b16 %v200
    %v546 = vunpack.c.h.b16 %v200
    %v547 = vunpack.c.l.b16 %v201
    %v548 = vunpack.c.h.b16 %v201
    %v549 = vunpack.c.l.b16 %v202
    %v550 = vunpack.c.h.b16 %v202
    %v551 = vunpack.c.l.b16 %v203
    %v552 = vunpack.c.h.b16 %v203
    %v553 = vunpack.c.l.b16 %v204
    %v554 = vunpack.c.h.b16 %v204
    %v555 = vunpack.c.l.b16 %v205
    %v556 = vunpack.c.h.b16 %v205
    %v557 = vunpack.c.l.b16 %v206
    %v558 = vunpack.c.h.b16 %v206
    %v559 = vunpack.c.l.b16 %v207
    %v560 = vunpack.c.h.b16 %v207
    %v561 = vunpack.c.l.b16 %v208
    %v562 = vunpack.c.h.b16 %v208
    %v563 = vunpack.c.l.b16 %v209
    %v564 = vunpack.c.h.b16 %v209
    %v565 = vunpack.c.l.b16 %v210
    %v566 = vunpack.c.h.b16 %v210
    %v567 = vunpack.c.l.b16 %v211
    %v568 = vunpack.c.h.b16 %v211
    %v569 = vunpack.c.l.b16 %v212
    %v570 = vunpack.c.h.b16 %v212
    %v571 = vunpack.c.l.b16 %v213
    %v572 = vunpack.c.h.b16 %v213
    %v573 = vunpack.c.l.b16 %v214
    %v574 = vunpack.c.h.b16 %v214
    %v575 = vunpack.c.l.b16 %v215
    %v576 = vunpack.c.h.b16 %v215
    %v577 = vunpack.c.l.b16 %v216
    %v578 = vunpack.c.h.b16 %v216
    %v579 = vunpack.c.l.b16 %v217
    %v580 = vunpack.c.h.b16 %v217
    %v581 = vunpack.c.l.b16 %v218
    %v582 = vunpack.c.h.b16 %v218
    %v583 = vunpack.c.l.b16 %v219
    %v584 = vunpack.c.h.b16 %v219
    %v585 = vunpack.c.l.b16 %v220
    %v586 = vunpack.c.h.b16 %v220
    %v587 = vunpack.c.l.b16 %v221
    %v588 = vunpack.c.h.b16 %v221
    %v589 = vunpack.c.l.b16 %v222
    %v590 = vunpack.c.h.b16 %v222
    %v591 = vunpack.c.l.b16 %v223
    %v592 = vunpack.c.h.b16 %v223
    %v593 = vunpack.c.l.b16 %v224
    %v594 = vunpack.c.h.b16 %v224
    %v595 = vunpack.c.l.b16 %v225
    %v596 = vunpack.c.h.b16 %v225
    %v597 = vunpack.c.l.b16 %v226
    %v598 = vunpack.c.h.b16 %v226
    %v599 = vunpack.c.l.b16 %v227
    %v600 = vunpack.c.h.b16 %v227
    %v601 = vunpack.c.l.b16 %v228
    %v602 = vunpack.c.h.b16 %v228
    %v603 = vunpack.c.l.b16 %v229
    %v604 = vunpack.c.h.b16 %v229
    %v605 = vunpack.c.l.b16 %v230
    %v606 = vunpack.c.h.b16 %v230
    %v607 = vunpack.c.l.b16 %v231
    %v608 = vunpack.c.h.b16 %v231
    %v609 = vunpack.c.l.b16 %v232
    %v610 = vunpack.c.h.b16 %v232
    %v611 = vunpack.c.l.b16 %v233
    %v612 = vunpack.c.h.b16 %v233
    %v613 = vunpack.c.l.b16 %v234
    %v614 = vunpack.c.h.b16 %v234
    %v615 = vunpack.c.l.b16 %v235
    %v616 = vunpack.c.h.b16 %v235
    %v617 = vunpack.c.l.b16 %v236
    %v618 = vunpack.c.h.b16 %v236
    %v619 = vunpack.c.l.b16 %v237
    %v620 = vunpack.c.h.b16 %v237
    %v621 = vunpack.c.l.b16 %v238
    %v622 = vunpack.c.h.b16 %v238
    %v623 = vunpack.c.l.b16 %v239
    %v624 = vunpack.c.h.b16 %v239
    %v625 = vunpack.c.l.b16 %v240
    %v626 = vunpack.c.h.b16 %v240
    %v627 = vunpack.c.l.b16 %v241
    %v628 = vunpack.c.h.b16 %v241
    %v629 = vunpack.c.l.b16 %v242
    %v630 = vunpack.c.h.b16 %v242
    %v631 = vunpack.c.l.b16 %v243
    %v632 = vunpack.c.h.b16 %v243
    %v633 = vunpack.c.l.b16 %v244
    %v634 = vunpack.c.h.b16 %v244
    %v635 = vunpack.c.l.b16 %v245
    %v636 = vunpack.c.h.b16 %v245
    %v637 = vunpack.c.l.b16 %v246
    %v638 = vunpack.c.h.b16 %v246
    %v639 = vunpack.c.l.b16 %v247
    %v640 = vunpack.c.h.b16 %v247
    %v641 = vunpack.c.l.b16 %v248
    %v642 = vunpack.c.h.b16 %v248
    %v643 = vunpack.c.l.b16 %v249
    %v644 = vunpack.c.h.b16 %v249
    %v645 = vunpack.c.l.b16 %v250
    %v646 = vunpack.c.h.b16 %v250
    %v647 = vunpack.c.l.b16 %v251
    %v648 = vunpack.c.h.b16 %v251
    %v649 = vunpack.c.l.b16 %v252
    %v650 = vunpack.c.h.b16 %v252
    %v651 = vunpack.c.l.b16 %v253
    %v652 = vunpack.c.h.b16 %v253
    %v653 = vunpack.c.l.b16 %v254
    %v654 = vunpack.c.h.b16 %v254
    %v655 = vunpack.c.l.b16 %v255
    %v656 = vunpack.c.h.b16 %v255
    %v657 = vunpack.c.l.b16 %v256
    %v658 = vunpack.c.h.b16 %v256
    %v659 = vunpack.c.l.b16 %v257
    %v660 = vunpack.c.h.b16 %v257
    %v661 = vunpack.c.l.b16 %v258
    %v662 = vunpack.c.h.b16 %v258
    %v663 = vunpack.c.l.b16 %v259
    %v664 = vunpack.c.h.b16 %v259
    %v665 = vunpack.c.l.b16 %v260
    %v666 = vunpack.c.h.b16 %v260
    %v667 = vunpack.c.l.b16 %v261
    %v668 = vunpack.c.h.b16 %v261
    %v669 = vunpack.c.l.b16 %v262
    %v670 = vunpack.c.h.b16 %v262
    %v671 = vunpack.c.l.b16 %v263
    %v672 = vunpack.c.h.b16 %v263
    %v673 = vunpack.c.l.b16 %v264
    %v674 = vunpack.c.h.b16 %v264
    %v675 = vunpack.c.l.b16 %v265
    %v676 = vunpack.c.h.b16 %v265
    %v677 = vunpack.c.l.b16 %v266
    %v678 = vunpack.c.h.b16 %v266
    %v679 = vunpack.c.l.b16 %v267
    %v680 = vunpack.c.h.b16 %v267
    %v681 = vunpack.c.l.b16 %v268
    %v682 = vunpack.c.h.b16 %v268
    %v683 = vunpack.c.l.b16 %v269
    %v684 = vunpack.c.h.b16 %v269
    %v685 = vunpack.c.l.b16 %v270
    %v686 = vunpack.c.h.b16 %v270
    %v687 = vunpack.c.l.b16 %v271
    %v688 = vunpack.c.h.b16 %v271
    %v689 = vunpack.c.l.b16 %v272
    %v690 = vunpack.c.h.b16 %v272
    %v691 = vunpack.c.l.b16 %v273
    %v692 = vunpack.c.h.b16 %v273
    %v693 = vunpack.c.l.b16 %v274
    %v694 = vunpack.c.h.b16 %v274
    %v695 = vunpack.c.l.b16 %v275
    %v696 = vunpack.c.h.b16 %v275
    %v697 = vunpack.c.l.b16 %v276
    %v698 = vunpack.c.h.b16 %v276
    %v699 = vunpack.c.l.b16 %v277
    %v700 = vunpack.c.h.b16 %v277
    %v701 = vunpack.c.l.b16 %v278
    %v702 = vunpack.c.h.b16 %v278
    %v703 = vunpack.c.l.b16 %v279
    %v704 = vunpack.c.h.b16 %v279
    %v705 = vunpack.c.l.b16 %v280
    %v706 = vunpack.c.h.b16 %v280
    %v707 = vunpack.c.l.b16 %v281
    %v708 = vunpack.c.h.b16 %v281
    %v709 = vunpack.c.l.b16 %v282
    %v710 = vunpack.c.h.b16 %v282
    %v711 = vpack.c.b16 %v459, %v455
    %v712 = vpack.c.b16 %v460, %v456
    %v713 = vpack.c.b16 %v461, %v457
    %v714 = vpack.c.b16 %v462, %v458
    %v715 = vpack.c.b16 %v467, %v463
    %v716 = vpack.c.b16 %v468, %v464
    %v717 = vpack.c.b16 %v469, %v465
    %v718 = vpack.c.b16 %v470, %v466
    %v719 = vpack.c.b16 %v475, %v471
    %v720 = vpack.c.b16 %v476, %v472
    %v721 = vpack.c.b16 %v477, %v473
    %v722 = vpack.c.b16 %v478, %v474
    %v723 = vpack.c.b16 %v483, %v479
    %v724 = vpack.c.b16 %v484, %v480
    %v725 = vpack.c.b16 %v485, %v481
    %v726 = vpack.c.b16 %v486, %v482
    %v727 = vpack.c.b16 %v491, %v487
    %v728 = vpack.c.b16 %v492, %v488
    %v729 = vpack.c.b16 %v493, %v489
    %v730 = vpack.c.b16 %v494, %v490
    %v731 = vpack.c.b16 %v499, %v495
    %v732 = vpack.c.b16 %v500, %v496
    %v733 = vpack.c.b16 %v501, %v497
    %v734 = vpack.c.b16 %v502, %v498
    %v735 = vpack.c.b16 %v507, %v503
    %v736 = vpack.c.b16 %v508, %v504
    %v737 = vpack.c.b16 %v509, %v505
    %v738 = vpack.c.b16 %v510, %v506
    %v739 = vpack.c.b16 %v515, %v511
    %v740 = vpack.c.b16 %v516, %v512
    %v741 = vpack.c.b16 %v517, %v513
    %v742 = vpack.c.b16 %v518, %v514
    %v743 = vpack.c.b16 %v523, %v519
    %v744 = vpack.c.b16 %v524, %v520
    %v745 = vpack.c.b16 %v525, %v521
    %v746 = vpack.c.b16 %v526, %v522
    %v747 = vpack.c.b16 %v531, %v527
    %v748 = vpack.c.b16 %v532, %v528
    %v749 = vpack.c.b16 %v533, %v529
    %v750 = vpack.c.b16 %v534, %v530
    %v751 = vpack.c.b16 %v539, %v535
    %v752 = vpack.c.b16 %v540, %v536
    %v753 = vpack.c.b16 %v541, %v537
    %v754 = vpack.c.b16 %v542, %v538
    %v755 = vpack.c.b16 %v547, %v543
    %v756 = vpack.c.b16 %v548, %v544
    %v757 = vpack.c.b16 %v549, %v545
    %v758 = vpack.c.b16 %v550, %v546
    %v759 = vpack.c.b16 %v555, %v551
    %v760 = vpack.c.b16 %v556, %v552
    %v761 = vpack.c.b16 %v557, %v553
    %v762 = vpack.c.b16 %v558, %v554
    %v763 = vpack.c.b16 %v563, %v559
    %v764 = vpack.c.b16 %v564, %v560
    %v765 = vpack.c.b16 %v565, %v561
    %v766 = vpack.c.b16 %v566, %v562
    %v767 = vpack.c.b16 %v571, %v567
    %v768 = vpack.c.b16 %v572, %v568
    %v769 = vpack.c.b16 %v573, %v569
    %v770 = vpack.c.b16 %v574, %v570
    %v771 = vpack.c.b16 %v579, %v575
    %v772 = vpack.c.b16 %v580, %v576
    %v773 = vpack.c.b16 %v581, %v577
    %v774 = vpack.c.b16 %v582, %v578
    %v775 = vpack.c.b16 %v587, %v583
    %v776 = vpack.c.b16 %v588, %v584
    %v777 = vpack.c.b16 %v589, %v585
    %v778 = vpack.c.b16 %v590, %v586
    %v779 = vpack.c.b16 %v595, %v591
    %v780 = vpack.c.b16 %v596, %v592
    %v781 = vpack.c.b16 %v597, %v593
    %v782 = vpack.c.b16 %v598, %v594
    %v783 = vpack.c.b16 %v603, %v599
    %v784 = vpack.c.b16 %v604, %v600
    %v785 = vpack.c.b16 %v605, %v601
    %v786 = vpack.c.b16 %v606, %v602
    %v787 = vpack.c.b16 %v611, %v607
    %v788 = vpack.c.b16 %v612, %v608
    %v789 = vpack.c.b16 %v613, %v609
    %v790 = vpack.c.b16 %v614, %v610
    %v791 = vpack.c.b16 %v619, %v615
    %v792 = vpack.c.b16 %v620, %v616
    %v793 = vpack.c.b16 %v621, %v617
    %v794 = vpack.c.b16 %v622, %v618
    %v795 = vpack.c.b16 %v627, %v623
    %v796 = vpack.c.b16 %v628, %v624
    %v797 = vpack.c.b16 %v629, %v625
    %v798 = vpack.c.b16 %v630, %v626
    %v799 = vpack.c.b16 %v635, %v631
    %v800 = vpack.c.b16 %v636, %v632
    %v801 = vpack.c.b16 %v637, %v633
    %v802 = vpack.c.b16 %v638, %v634
    %v803 = vpack.c.b16 %v643, %v639
    %v804 = vpack.c.b16 %v644, %v640
    %v805 = vpack.c.b16 %v645, %v641
    %v806 = vpack.c.b16 %v646, %v642
    %v807 = vpack.c.b16 %v651, %v647
    %v808 = vpack.c.b16 %v652, %v648
    %v809 = vpack.c.b16 %v653, %v649
    %v810 = vpack.c.b16 %v654, %v650
    %v811 = vpack.c.b16 %v659, %v655
    %v812 = vpack.c.b16 %v660, %v656
    %v813 = vpack.c.b16 %v661, %v657
    %v814 = vpack.c.b16 %v662, %v658
    %v815 = vpack.c.b16 %v667, %v663
    %v816 = vpack.c.b16 %v668, %v664
    %v817 = vpack.c.b16 %v669, %v665
    %v818 = vpack.c.b16 %v670, %v666
    %v819 = vpack.c.b16 %v675, %v671
    %v820 = vpack.c.b16 %v676, %v672
    %v821 = vpack.c.b16 %v677, %v673
    %v822 = vpack.c.b16 %v678, %v674
    %v823 = vpack.c.b16 %v683, %v679
    %v824 = vpack.c.b16 %v684, %v680
    %v825 = vpack.c.b16 %v685, %v681
    %v826 = vpack.c.b16 %v686, %v682
    %v827 = vpack.c.b16 %v691, %v687
    %v828 = vpack.c.b16 %v692, %v688
    %v829 = vpack.c.b16 %v693, %v689
    %v830 = vpack.c.b16 %v694, %v690
    %v831 = vpack.c.b16 %v699, %v695
    %v832 = vpack.c.b16 %v700, %v696
    %v833 = vpack.c.b16 %v701, %v697
    %v834 = vpack.c.b16 %v702, %v698
    %v835 = vpack.c.b16 %v707, %v703
    %v836 = vpack.c.b16 %v708, %v704
    %v837 = vpack.c.b16 %v709, %v705
    %v838 = vpack.c.b16 %v710, %v706
    %967 = vmatpush.bf16.msra.mxu0 %v739
    %968 = vmatpush.bf16.msra.mxu0 %v735
    %969 = vmatpush.bf16.msra.mxu0 %v731
    %970 = vmatpush.bf16.msra.mxu0 %v727
    %971 = vmatpush.bf16.msra.mxu0 %v723
    %972 = vmatpush.bf16.msra.mxu0 %v719
    %973 = vmatpush.bf16.msra.mxu0 %v715
    %974 = vmatpush.bf16.msra.mxu0 %v711
    %975 = vmatmul.bf16.gmra.mxu0 %v311
    %v976 = vpop.f32.mrf.mxu0
    %v977 = vadd.f32 %v285, %v976
    %v978 = vpop.f32.mrf.mxu0
    %v979 = vadd.f32 %v285, %v978
    %980 = vmatmul.bf16.gmra.mxu0 %v315
    %v981 = vpop.f32.mrf.mxu0
    %v982 = vadd.f32 %v285, %v981
    %v983 = vpop.f32.mrf.mxu0
    %984 = vdwg.mxu0
    %985 = vmatpush.bf16.msra.mxu0 %v771
    %986 = vmatpush.bf16.msra.mxu0 %v767
    %987 = vmatpush.bf16.msra.mxu0 %v763
    %988 = vmatpush.bf16.msra.mxu0 %v759
    %989 = vmatpush.bf16.msra.mxu0 %v755
    %990 = vmatpush.bf16.msra.mxu0 %v751
    %991 = vmatpush.bf16.msra.mxu0 %v747
    %992 = vmatpush.bf16.msra.mxu0 %v743
    %993 = vmatmul.bf16.gmra.mxu0 %v312
    %v994 = vpop.f32.mrf.mxu0
    %v995 = vadd.f32 %v977, %v994
    %v996 = vpop.f32.mrf.mxu0
    %v997 = vadd.f32 %v979, %v996
    %998 = vmatmul.bf16.gmra.mxu0 %v316
    %v999 = vpop.f32.mrf.mxu0
    %v1000 = vadd.f32 %v982, %v999
    %v1001 = vpop.f32.mrf.mxu0
    %1002 = vdwg.mxu0
    %1003 = vmatpush.bf16.msra.mxu0 %v803
    %1004 = vmatpush.bf16.msra.mxu0 %v799
    %1005 = vmatpush.bf16.msra.mxu0 %v795
    %1006 = vmatpush.bf16.msra.mxu0 %v791
    %1007 = vmatpush.bf16.msra.mxu0 %v787
    %1008 = vmatpush.bf16.msra.mxu0 %v783
    %1009 = vmatpush.bf16.msra.mxu0 %v779
    %1010 = vmatpush.bf16.msra.mxu0 %v775
    %1011 = vmatmul.bf16.gmra.mxu0 %v313
    %v1012 = vpop.f32.mrf.mxu0
    %v1013 = vadd.f32 %v995, %v1012
    %v1014 = vpop.f32.mrf.mxu0
    %v1015 = vadd.f32 %v997, %v1014
    %1016 = vmatmul.bf16.gmra.mxu0 %v317
    %v1017 = vpop.f32.mrf.mxu0
    %v1018 = vadd.f32 %v1000, %v1017
    %v1019 = vpop.f32.mrf.mxu0
    %1020 = vdwg.mxu0
    %1021 = vmatpush.bf16.msra.mxu0 %v835
    %1022 = vmatpush.bf16.msra.mxu0 %v831
    %1023 = vmatpush.bf16.msra.mxu0 %v827
    %1024 = vmatpush.bf16.msra.mxu0 %v823
    %1025 = vmatpush.bf16.msra.mxu0 %v819
    %1026 = vmatpush.bf16.msra.mxu0 %v815
    %1027 = vmatpush.bf16.msra.mxu0 %v811
    %1028 = vmatpush.bf16.msra.mxu0 %v807
    %1029 = vmatmul.bf16.gmra.mxu0 %v314
    %v1030 = vpop.f32.mrf.mxu0
    %v1031 = vadd.f32 %v1013, %v1030
    %v1032 = vpop.f32.mrf.mxu0
    %v1033 = vadd.f32 %v1015, %v1032
    %1034 = vmatmul.bf16.gmra.mxu0 %v318
    %v1035 = vpop.f32.mrf.mxu0
    %v1036 = vadd.f32 %v1018, %v1035
    %v1037 = vpop.f32.mrf.mxu0
    %1038 = vdwg.mxu0
    %1039 = vmatpush.bf16.msra.mxu0 %v740
    %1040 = vmatpush.bf16.msra.mxu0 %v736
    %1041 = vmatpush.bf16.msra.mxu0 %v732
    %1042 = vmatpush.bf16.msra.mxu0 %v728
    %1043 = vmatpush.bf16.msra.mxu0 %v724
    %1044 = vmatpush.bf16.msra.mxu0 %v720
    %1045 = vmatpush.bf16.msra.mxu0 %v716
    %1046 = vmatpush.bf16.msra.mxu0 %v712
    %1047 = vmatmul.bf16.gmra.mxu0 %v311
    %v1048 = vpop.f32.mrf.mxu0
    %v1049 = vadd.f32 %v286, %v1048
    %v1050 = vpop.f32.mrf.mxu0
    %v1051 = vadd.f32 %v286, %v1050
    %1052 = vmatmul.bf16.gmra.mxu0 %v315
    %v1053 = vpop.f32.mrf.mxu0
    %v1054 = vadd.f32 %v286, %v1053
    %v1055 = vpop.f32.mrf.mxu0
    %1056 = vdwg.mxu0
    %1057 = vmatpush.bf16.msra.mxu0 %v772
    %1058 = vmatpush.bf16.msra.mxu0 %v768
    %1059 = vmatpush.bf16.msra.mxu0 %v764
    %1060 = vmatpush.bf16.msra.mxu0 %v760
    %1061 = vmatpush.bf16.msra.mxu0 %v756
    %1062 = vmatpush.bf16.msra.mxu0 %v752
    %1063 = vmatpush.bf16.msra.mxu0 %v748
    %1064 = vmatpush.bf16.msra.mxu0 %v744
    %1065 = vmatmul.bf16.gmra.mxu0 %v312
    %v1066 = vpop.f32.mrf.mxu0
    %v1067 = vadd.f32 %v1049, %v1066
    %v1068 = vpop.f32.mrf.mxu0
    %v1069 = vadd.f32 %v1051, %v1068
    %1070 = vmatmul.bf16.gmra.mxu0 %v316
    %v1071 = vpop.f32.mrf.mxu0
    %v1072 = vadd.f32 %v1054, %v1071
    %v1073 = vpop.f32.mrf.mxu0
    %1074 = vdwg.mxu0
    %1075 = vmatpush.bf16.msra.mxu0 %v804
    %1076 = vmatpush.bf16.msra.mxu0 %v800
    %1077 = vmatpush.bf16.msra.mxu0 %v796
    %1078 = vmatpush.bf16.msra.mxu0 %v792
    %1079 = vmatpush.bf16.msra.mxu0 %v788
    %1080 = vmatpush.bf16.msra.mxu0 %v784
    %1081 = vmatpush.bf16.msra.mxu0 %v780
    %1082 = vmatpush.bf16.msra.mxu0 %v776
    %1083 = vmatmul.bf16.gmra.mxu0 %v313
    %v1084 = vpop.f32.mrf.mxu0
    %v1085 = vadd.f32 %v1067, %v1084
    %v1086 = vpop.f32.mrf.mxu0
    %v1087 = vadd.f32 %v1069, %v1086
    %1088 = vmatmul.bf16.gmra.mxu0 %v317
    %v1089 = vpop.f32.mrf.mxu0
    %v1090 = vadd.f32 %v1072, %v1089
    %v1091 = vpop.f32.mrf.mxu0
    %1092 = vdwg.mxu0
    %1093 = vmatpush.bf16.msra.mxu0 %v836
    %1094 = vmatpush.bf16.msra.mxu0 %v832
    %1095 = vmatpush.bf16.msra.mxu0 %v828
    %1096 = vmatpush.bf16.msra.mxu0 %v824
    %1097 = vmatpush.bf16.msra.mxu0 %v820
    %1098 = vmatpush.bf16.msra.mxu0 %v816
    %1099 = vmatpush.bf16.msra.mxu0 %v812
    %1100 = vmatpush.bf16.msra.mxu0 %v808
    %1101 = vmatmul.bf16.gmra.mxu0 %v314
    %v1102 = vpop.f32.mrf.mxu0
    %v1103 = vadd.f32 %v1085, %v1102
    %v1104 = vpop.f32.mrf.mxu0
    %v1105 = vadd.f32 %v1087, %v1104
    %1106 = vmatmul.bf16.gmra.mxu0 %v318
    %v1107 = vpop.f32.mrf.mxu0
    %v1108 = vadd.f32 %v1090, %v1107
    %v1109 = vpop.f32.mrf.mxu0
    %1110 = vdwg.mxu0
    %1111 = vmatpush.bf16.msra.mxu0 %v741
    %1112 = vmatpush.bf16.msra.mxu0 %v737
    %1113 = vmatpush.bf16.msra.mxu0 %v733
    %1114 = vmatpush.bf16.msra.mxu0 %v729
    %1115 = vmatpush.bf16.msra.mxu0 %v725
    %1116 = vmatpush.bf16.msra.mxu0 %v721
    %1117 = vmatpush.bf16.msra.mxu0 %v717
    %1118 = vmatpush.bf16.msra.mxu0 %v713
    %1119 = vmatmul.bf16.gmra.mxu0 %v311
    %v1120 = vpop.f32.mrf.mxu0
    %v1121 = vadd.f32 %v287, %v1120
    %v1122 = vpop.f32.mrf.mxu0
    %v1123 = vadd.f32 %v287, %v1122
    %1124 = vmatmul.bf16.gmra.mxu0 %v315
    %v1125 = vpop.f32.mrf.mxu0
    %v1126 = vadd.f32 %v287, %v1125
    %v1127 = vpop.f32.mrf.mxu0
    %1128 = vdwg.mxu0
    %1129 = vmatpush.bf16.msra.mxu0 %v773
    %1130 = vmatpush.bf16.msra.mxu0 %v769
    %1131 = vmatpush.bf16.msra.mxu0 %v765
    %1132 = vmatpush.bf16.msra.mxu0 %v761
    %1133 = vmatpush.bf16.msra.mxu0 %v757
    %1134 = vmatpush.bf16.msra.mxu0 %v753
    %1135 = vmatpush.bf16.msra.mxu0 %v749
    %1136 = vmatpush.bf16.msra.mxu0 %v745
    %1137 = vmatmul.bf16.gmra.mxu0 %v312
    %v1138 = vpop.f32.mrf.mxu0
    %v1139 = vadd.f32 %v1121, %v1138
    %v1140 = vpop.f32.mrf.mxu0
    %v1141 = vadd.f32 %v1123, %v1140
    %1142 = vmatmul.bf16.gmra.mxu0 %v316
    %v1143 = vpop.f32.mrf.mxu0
    %v1144 = vadd.f32 %v1126, %v1143
    %v1145 = vpop.f32.mrf.mxu0
    %1146 = vdwg.mxu0
    %1147 = vmatpush.bf16.msra.mxu0 %v805
    %1148 = vmatpush.bf16.msra.mxu0 %v801
    %1149 = vmatpush.bf16.msra.mxu0 %v797
    %1150 = vmatpush.bf16.msra.mxu0 %v793
    %1151 = vmatpush.bf16.msra.mxu0 %v789
    %1152 = vmatpush.bf16.msra.mxu0 %v785
    %1153 = vmatpush.bf16.msra.mxu0 %v781
    %1154 = vmatpush.bf16.msra.mxu0 %v777
    %1155 = vmatmul.bf16.gmra.mxu0 %v313
    %v1156 = vpop.f32.mrf.mxu0
    %v1157 = vadd.f32 %v1139, %v1156
    %v1158 = vpop.f32.mrf.mxu0
    %v1159 = vadd.f32 %v1141, %v1158
    %1160 = vmatmul.bf16.gmra.mxu0 %v317
    %v1161 = vpop.f32.mrf.mxu0
    %v1162 = vadd.f32 %v1144, %v1161
    %v1163 = vpop.f32.mrf.mxu0
    %1164 = vdwg.mxu0
    %1165 = vmatpush.bf16.msra.mxu0 %v837
    %1166 = vmatpush.bf16.msra.mxu0 %v833
    %1167 = vmatpush.bf16.msra.mxu0 %v829
    %1168 = vmatpush.bf16.msra.mxu0 %v825
    %1169 = vmatpush.bf16.msra.mxu0 %v821
    %1170 = vmatpush.bf16.msra.mxu0 %v817
    %1171 = vmatpush.bf16.msra.mxu0 %v813
    %1172 = vmatpush.bf16.msra.mxu0 %v809
    %1173 = vmatmul.bf16.gmra.mxu0 %v314
    %v1174 = vpop.f32.mrf.mxu0
    %v1175 = vadd.f32 %v1157, %v1174
    %v1176 = vpop.f32.mrf.mxu0
    %v1177 = vadd.f32 %v1159, %v1176
    %1178 = vmatmul.bf16.gmra.mxu0 %v318
    %v1179 = vpop.f32.mrf.mxu0
    %v1180 = vadd.f32 %v1162, %v1179
    %v1181 = vpop.f32.mrf.mxu0
    %1182 = vdwg.mxu0
    %1183 = vmatpush.bf16.msra.mxu0 %v742
    %1184 = vmatpush.bf16.msra.mxu0 %v738
    %1185 = vmatpush.bf16.msra.mxu0 %v734
    %1186 = vmatpush.bf16.msra.mxu0 %v730
    %1187 = vmatpush.bf16.msra.mxu0 %v726
    %1188 = vmatpush.bf16.msra.mxu0 %v722
    %1189 = vmatpush.bf16.msra.mxu0 %v718
    %1190 = vmatpush.bf16.msra.mxu0 %v714
    %1191 = vmatmul.bf16.gmra.mxu0 %v311
    %v1192 = vpop.f32.mrf.mxu0
    %v1193 = vadd.f32 %v288, %v1192
    %v1194 = vpop.f32.mrf.mxu0
    %v1195 = vadd.f32 %v288, %v1194
    %1196 = vmatmul.bf16.gmra.mxu0 %v315
    %v1197 = vpop.f32.mrf.mxu0
    %v1198 = vadd.f32 %v288, %v1197
    %v1199 = vpop.f32.mrf.mxu0
    %1200 = vdwg.mxu0
    %1201 = vmatpush.bf16.msra.mxu0 %v774
    %1202 = vmatpush.bf16.msra.mxu0 %v770
    %1203 = vmatpush.bf16.msra.mxu0 %v766
    %1204 = vmatpush.bf16.msra.mxu0 %v762
    %1205 = vmatpush.bf16.msra.mxu0 %v758
    %1206 = vmatpush.bf16.msra.mxu0 %v754
    %1207 = vmatpush.bf16.msra.mxu0 %v750
    %1208 = vmatpush.bf16.msra.mxu0 %v746
    %1209 = vmatmul.bf16.gmra.mxu0 %v312
    %v1210 = vpop.f32.mrf.mxu0
    %v1211 = vadd.f32 %v1193, %v1210
    %v1212 = vpop.f32.mrf.mxu0
    %v1213 = vadd.f32 %v1195, %v1212
    %1214 = vmatmul.bf16.gmra.mxu0 %v316
    %v1215 = vpop.f32.mrf.mxu0
    %v1216 = vadd.f32 %v1198, %v1215
    %v1217 = vpop.f32.mrf.mxu0
    %1218 = vdwg.mxu0
    %1219 = vmatpush.bf16.msra.mxu0 %v806
    %1220 = vmatpush.bf16.msra.mxu0 %v802
    %1221 = vmatpush.bf16.msra.mxu0 %v798
    %1222 = vmatpush.bf16.msra.mxu0 %v794
    %1223 = vmatpush.bf16.msra.mxu0 %v790
    %1224 = vmatpush.bf16.msra.mxu0 %v786
    %1225 = vmatpush.bf16.msra.mxu0 %v782
    %1226 = vmatpush.bf16.msra.mxu0 %v778
    %1227 = vmatmul.bf16.gmra.mxu0 %v313
    %v1228 = vpop.f32.mrf.mxu0
    %v1229 = vadd.f32 %v1211, %v1228
    %v1230 = vpop.f32.mrf.mxu0
    %v1231 = vadd.f32 %v1213, %v1230
    %1232 = vmatmul.bf16.gmra.mxu0 %v317
    %v1233 = vpop.f32.mrf.mxu0
    %v1234 = vadd.f32 %v1216, %v1233
    %v1235 = vpop.f32.mrf.mxu0
    %1236 = vdwg.mxu0
    %1237 = vmatpush.bf16.msra.mxu0 %v838
    %1238 = vmatpush.bf16.msra.mxu0 %v834
    %1239 = vmatpush.bf16.msra.mxu0 %v830
    %1240 = vmatpush.bf16.msra.mxu0 %v826
    %1241 = vmatpush.bf16.msra.mxu0 %v822
    %1242 = vmatpush.bf16.msra.mxu0 %v818
    %1243 = vmatpush.bf16.msra.mxu0 %v814
    %1244 = vmatpush.bf16.msra.mxu0 %v810
    %1245 = vmatmul.bf16.gmra.mxu0 %v314
    %v1246 = vpop.f32.mrf.mxu0
    %v1247 = vadd.f32 %v1229, %v1246
    %v1248 = vpop.f32.mrf.mxu0
    %v1249 = vadd.f32 %v1231, %v1248
    %1250 = vmatmul.bf16.gmra.mxu0 %v318
    %v1251 = vpop.f32.mrf.mxu0
    %v1252 = vadd.f32 %v1234, %v1251
    %v1253 = vpop.f32.mrf.mxu0
    %1254 = vdwg.mxu0
    %1255 = vst [vmem:[#allocation11] sm:$0xff] %v1031
    %1256 = vst [vmem:[#allocation11 + $0x8] sm:$0xff] %v1103
    %1257 = vst [vmem:[#allocation11 + $0x10] sm:$0xff] %v1175
    %1258 = vst [vmem:[#allocation11 + $0x18] sm:$0xff] %v1247
    %1259 = vst [vmem:[#allocation11 + $0x20] sm:$0xff] %v1033
    %1260 = vst [vmem:[#allocation11 + $0x28] sm:$0xff] %v1105
    %1261 = vst [vmem:[#allocation11 + $0x30] sm:$0xff] %v1177
    %1262 = vst [vmem:[#allocation11 + $0x38] sm:$0xff] %v1249
    %1263 = vst [vmem:[#allocation11 + $0x40] sm:$0xff] %v1036
    %1264 = vst [vmem:[#allocation11 + $0x48] sm:$0xff] %v1108
    %1265 = vst [vmem:[#allocation11 + $0x50] sm:$0xff] %v1180
    %1266 = vst [vmem:[#allocation11 + $0x58] sm:$0xff] %v1252
    // Predicated region
    $region38: #{tpu_custom_call.1} parent=1 // pred_check
      _
    $region39: #{tpu_custom_call.1} parent=1 // pred_check_branch
      %1268 = sbr.rel (0) target = $region41
    $region40: #{tpu_custom_call.1} parent=1 // pred_region
      %1270 = vsyncadd [#allocation5], 0
      %s1271 = sshll.u32 [#allocation11], 4
      %s1272 = int_to_ptr.vmem [resolvable:$true] %s1271
      %s1273 = sshll.u32 %s4, 4
      %s1274 = int_to_ptr.hbm [resolvable:$true] %s1273
      %1279 = dma.vmem_to_hbm [thread:$0]  %s1272, 1536, %s1274, [#allocation5], 512, 512, 32
    $region41: #{tpu_custom_call.1} parent=1 // pred_fallthru
      _
    // Predicated region
    $region42: #{tpu_custom_call.1} parent=1 // pred_check
      _
    $region43: #{tpu_custom_call.1} parent=1 // pred_check_branch
      %1281 = sbr.rel (0) target = $region45
    $region44: #{tpu_custom_call.1} parent=1 // pred_region
      %1283 = dma.done [#allocation5], 1536
    $region45: #{tpu_custom_call.1} parent=1 // pred_fallthru
      _
    %1284 = vsyncpa [#allocation4], 1
    %1285 = vsyncpa [#allocation7], 1
    %1286 = vsyncpa [#allocation10], 1
    %1287 = vsyncpa [#allocation5], 1

</llo_original>
